<compile_context>
chip_gen: v6e
topology: v6e:2x2x1
jax: 0.10.0
libtpu: 0.0.40
codegen_flags: <defaults>
</compile_context>

<pallas_src>
from functools import partial

import jax
import jax.numpy as jnp
from jax import lax
from jax.experimental import pallas as pl
from jax.experimental.pallas import tpu as pltpu


def _deconv_gemm_kernel(w_ref, b_ref, cols_ref, o_ref):
    """One band of the phase-decomposed transposed-conv GEMM.

    w_ref:    (P2C, KKC)  per-phase sub-kernels stacked on rows, P2C = s*s*Cout
    b_ref:    (P2C, 1)    bias (replicated across phases)
    cols_ref: (KKC, TM)   ceil(K/s)^2 * Cin input taps for TM pixels of the phase grid
    o_ref:    (P2C, TM)   lane-dense output band (sublanes = phase*Cout, lanes = pixels)
    """
    acc = jnp.dot(w_ref[...], cols_ref[...], preferred_element_type=jnp.float32)
    # bias fused into the single store pass
    o_ref[...] = (acc + b_ref[...]).astype(o_ref.dtype)


@partial(jax.jit, static_argnames=("stride", "padding", "tm"))
def deconv2d_pallas(x_nchw, weight, bias, *, stride=1, padding=0, tm=1024):
    """ConvTranspose2d forward.

    x: (N, Cin, H, W), weight: (Cin, Cout, K, K) [PyTorch layout], bias: (Cout,).
    Returns (N, Cout, Ho, Wo) with Ho = (H-1)*stride - 2*padding + K.
    """
    N, Cin, H, W = x_nchw.shape
    Cin_w, Cout, K, _ = weight.shape
    assert Cin == Cin_w
    s, p = stride, padding

    Ho = (H - 1) * s - 2 * p + K
    Wo = (W - 1) * s - 2 * p + K
    assert Ho >= 1 and Wo >= 1, "ConvTranspose2d output size must be positive"

    # ---- phase decomposition bookkeeping -------------------------------------
    # out[oh] = sum_{ih*s + kh = oh + p} x[ih] * w[kh].  Write t = oh + p = s*q + r:
    #   z_r[q] = sum_j x[q - j] * w[s*j + r],  j in [0, ceil((K-r)/s)).
    # Every phase r lives on the same q-grid [0, H + ceil(K/s) - 1), so all s^2
    # phases fold into one GEMM with ceil(K/s)^2 taps over the ORIGINAL input.
    J = -(-K // s)                      # ceil(K / s): taps per spatial dim per phase
    pad = J - 1
    Hq, Wq = H + pad, W + pad           # shared per-phase pixel grid
    Mq = N * Hq * Wq
    KKC = J * J * Cin
    P2C = s * s * Cout

    # ---- taps over the original (undilated) input, in (KKC, M) order ---------
    x_t = jnp.transpose(x_nchw, (1, 0, 2, 3))                     # (Cin, N, H, W) — tiny leading-dim transpose
    xp = jnp.pad(x_t, ((0, 0), (0, 0), (pad, pad), (pad, pad)))   # zero halo for boundary taps
    taps = []
    for jh in range(J):
        for jw in range(J):
            h0, w0 = pad - jh, pad - jw
            taps.append(xp[:, :, h0:h0 + Hq, w0:w0 + Wq].reshape(Cin, Mq))
    cols = jnp.concatenate(taps, axis=0)                          # (KKC, Mq), no structural zeros

    # ---- per-phase sub-kernels stacked into one (P2C, KKC) lhs ---------------
    # W_big[(rh,rw,co), (jh,jw,ci)] = weight[ci, co, s*jh+rh, s*jw+rw] (0 if tap OOB)
    blocks = []
    for rh in range(s):
        for rw in range(s):
            row = []
            for jh in range(J):
                for jw in range(J):
                    kh, kw = s * jh + rh, s * jw + rw
                    if kh < K and kw < K:
                        row.append(weight[:, :, kh, kw].T)         # (Cout, Cin)
                    else:
                        row.append(jnp.zeros((Cout, Cin), weight.dtype))
            blocks.append(jnp.concatenate(row, axis=1))            # (Cout, KKC)
    w_big = jnp.concatenate(blocks, axis=0)                         # (P2C, KKC)
    b_big = jnp.tile(bias, s * s).reshape(P2C, 1)                   # (P2C, 1)

    # ---- band size: target tm, lane-aligned, keep >= 2 parallel bands (v7x) --
    band = max(128, min(tm, 128 * pl.cdiv(pl.cdiv(Mq, 2), 128)))
    Mp = band * pl.cdiv(Mq, band)
    cols = jnp.pad(cols, ((0, 0), (0, Mp - Mq)))

    out_dtype = x_nchw.dtype
    nbytes = lambda a: a.size * jnp.dtype(a.dtype).itemsize
    cost = pl.CostEstimate(
        flops=2 * Mp * KKC * P2C,
        transcendentals=0,
        bytes_accessed=(nbytes(cols) + nbytes(w_big) + nbytes(b_big)
                        + Mp * P2C * jnp.dtype(out_dtype).itemsize))

    out = pl.pallas_call(
        _deconv_gemm_kernel,
        out_shape=jax.ShapeDtypeStruct((P2C, Mp), out_dtype),
        grid=(Mp // band,),
        in_specs=[
            pl.BlockSpec((P2C, KKC), lambda i: (0, 0)),      # weight: grid-invariant, fetched once
            pl.BlockSpec((P2C, 1), lambda i: (0, 0)),        # bias:   grid-invariant
            pl.BlockSpec((KKC, band), lambda i: (0, i)),     # band of phase-grid pixels
        ],
        out_specs=pl.BlockSpec((P2C, band), lambda i: (0, i)),
        compiler_params=pltpu.CompilerParams(
            dimension_semantics=("parallel",)),              # bands independent -> megacore
        cost_estimate=cost,
    )(w_big, b_big, cols)

    # ---- pixel-shuffle the s*s phase planes back to NCHW and crop padding ----
    z = out[:, :Mq].reshape(s, s, Cout, N, Hq, Wq)
    z = jnp.transpose(z, (3, 2, 4, 0, 5, 1)).reshape(N, Cout, s * Hq, s * Wq)
    return z[:, :, p:p + Ho, p:p + Wo]


def deconv2d_reference(x_nchw, weight, bias, *, stride=1, padding=0):
    """Pure-JAX reference: full lhs-dilated conv with flipped kernel, then crop."""
    N, Cin, H, W = x_nchw.shape
    K = weight.shape[2]
    Ho = (H - 1) * stride - 2 * padding + K
    Wo = (W - 1) * stride - 2 * padding + K
    w_conv = jnp.transpose(jnp.flip(weight, (2, 3)), (1, 0, 2, 3))     # (Cout, Cin, K, K)
    full = lax.conv_general_dilated(
        x_nchw, w_conv, window_strides=(1, 1),
        padding=[(K - 1, K - 1)] * 2, lhs_dilation=(stride, stride),
        dimension_numbers=('NCHW', 'OIHW', 'NCHW'))
    out = full[:, :, padding:padding + Ho, padding:padding + Wo]
    return out + bias[None, :, None, None]


if __name__ == "__main__":
    key = jax.random.PRNGKey(0)

    def make(k, n, cin, cout, ksz, h, w, dtype=jnp.float32):
        kx, kw_, kb = jax.random.split(k, 3)
        x = jax.random.normal(kx, (n, cin, h, w), dtype=jnp.float32).astype(dtype)
        wgt = (0.1 * jax.random.normal(kw_, (cin, cout, ksz, ksz), dtype=jnp.float32)).astype(dtype)
        b = (0.1 * jax.random.normal(kb, (cout,), dtype=jnp.float32)).astype(dtype)
        return x, wgt, b

    # 1) the spec's configuration: Deconv2d(4, 8, kernel_size=3, stride=2, padding=1)
    x, wgt, b = make(key, 2, 4, 8, 3, 16, 16)
    out = jax.block_until_ready(deconv2d_pallas(x, wgt, b, stride=2, padding=1))
    ref = deconv2d_reference(x, wgt, b, stride=2, padding=1)
    assert out.shape == ref.shape == (2, 8, 31, 31), out.shape
    assert jnp.allclose(out, ref, atol=1e-4, rtol=1e-4), float(jnp.max(jnp.abs(out - ref)))

    # 2) stride=1 path (single phase, K^2 taps)
    x, wgt, b = make(jax.random.fold_in(key, 1), 2, 4, 6, 3, 8, 8)
    out = jax.block_until_ready(deconv2d_pallas(x, wgt, b, stride=1, padding=0))
    ref = deconv2d_reference(x, wgt, b, stride=1, padding=0)
    assert out.shape == ref.shape == (2, 6, 10, 10), out.shape
    assert jnp.allclose(out, ref, atol=1e-4, rtol=1e-4), float(jnp.max(jnp.abs(out - ref)))

    # 3) padding >= kernel_size (crop-dominated output window)
    x, wgt, b = make(jax.random.fold_in(key, 2), 2, 4, 8, 3, 8, 8)
    out = jax.block_until_ready(deconv2d_pallas(x, wgt, b, stride=2, padding=3))
    ref = deconv2d_reference(x, wgt, b, stride=2, padding=3)
    assert out.shape == ref.shape == (2, 8, 11, 11), out.shape
    assert jnp.allclose(out, ref, atol=1e-4, rtol=1e-4), float(jnp.max(jnp.abs(out - ref)))

    # 4) bf16 inputs stay bf16 end-to-end (no forced f32 upcast of weight/bias)
    x, wgt, b = make(jax.random.fold_in(key, 3), 2, 4, 8, 3, 16, 16, dtype=jnp.bfloat16)
    out = jax.block_until_ready(deconv2d_pallas(x, wgt, b, stride=2, padding=1))
    assert out.dtype == jnp.bfloat16 and out.shape == (2, 8, 31, 31)
    ref = deconv2d_reference(x.astype(jnp.float32), wgt.astype(jnp.float32),
                             b.astype(jnp.float32), stride=2, padding=1)
    assert jnp.allclose(out.astype(jnp.float32), ref, atol=5e-2, rtol=5e-2)

    print("KERNEL_OK")
</pallas_src>

<mosaic_0001>
module attributes {stable_mosaic.version = 11 : i64} {
  func.func @_deconv_gemm_kernel(%arg0: i32, %arg1: memref<32x16xf32, #tpu.memory_space<vmem>>, %arg2: memref<32x1xf32, #tpu.memory_space<vmem>>, %arg3: memref<16x384xf32, #tpu.memory_space<vmem>>, %arg4: memref<32x384xf32, #tpu.memory_space<vmem>>) attributes {dimension_semantics = [#tpu.dimension_semantics<parallel>], iteration_bounds = array<i64: 2>, scalar_prefetch = 0 : i64, scratch_operands = 0 : i64, tpu.core_type = #tpu.core_type<tc>, window_params = [{pipeline_mode = #tpu.pipeline_mode<synchronous>, transform_indices = @transform_0, window_bounds = array<i64: 32, 16>}, {pipeline_mode = #tpu.pipeline_mode<synchronous>, transform_indices = @transform_1, window_bounds = array<i64: 32, 1>}, {transform_indices = @transform_2, window_bounds = array<i64: 16, 384>}, {transform_indices = @transform_3, window_bounds = array<i64: 32, 384>}]} {
    %c0 = arith.constant 0 : index
    %c0_0 = arith.constant 0 : index
    %0 = vector.load %arg1[%c0, %c0_0] : memref<32x16xf32, #tpu.memory_space<vmem>>, vector<32x16xf32>
    %c0_1 = arith.constant 0 : index
    %c0_2 = arith.constant 0 : index
    %1 = vector.load %arg3[%c0_1, %c0_2] : memref<16x384xf32, #tpu.memory_space<vmem>>, vector<16x384xf32>
    %cst = arith.constant dense<0.000000e+00> : vector<32x384xf32>
    %2 = tpu.matmul %0, %1, %cst {dimension_numbers = #tpu.dot_dimension_numbers<[1], [0], [0], [1], [0, 0, 1, 1], [], []>} : vector<32x16xf32>, vector<16x384xf32>, vector<32x384xf32> -> vector<32x384xf32>
    %c0_3 = arith.constant 0 : index
    %c0_4 = arith.constant 0 : index
    %3 = vector.load %arg2[%c0_3, %c0_4] : memref<32x1xf32, #tpu.memory_space<vmem>>, vector<32x1xf32>
    %4 = vector.broadcast %3 : vector<32x1xf32> to vector<32x384xf32>
    %5 = arith.addf %2, %4 : vector<32x384xf32>
    %c0_5 = arith.constant 0 : index
    %c0_6 = arith.constant 0 : index
    %6 = vector.load %arg4[%c0_5, %c0_6] : memref<32x384xf32, #tpu.memory_space<vmem>>, vector<32x384xf32>
    tpu.vector_store %arg4[%c0_5, %c0_6], %5 {strides = array<i32>} : memref<32x384xf32, #tpu.memory_space<vmem>>, vector<32x384xf32>,
    return
  }
  func.func @transform_0(%arg0: i32) -> (i32, i32) {
    %c0_i32 = arith.constant 0 : i32
    %c0_i32_0 = arith.constant 0 : i32
    %c0_i32_1 = arith.constant 0 : i32
    return %c0_i32, %c0_i32_0 : i32, i32
  }
  func.func @transform_1(%arg0: i32) -> (i32, i32) {
    %c0_i32 = arith.constant 0 : i32
    %c0_i32_0 = arith.constant 0 : i32
    %c0_i32_1 = arith.constant 0 : i32
    return %c0_i32, %c0_i32_0 : i32, i32
  }
  func.func @transform_2(%arg0: i32) -> (i32, i32) {
    %c0_i32 = arith.constant 0 : i32
    %c0_i32_0 = arith.constant 0 : i32
    return %c0_i32, %arg0 : i32, i32
  }
  func.func @transform_3(%arg0: i32) -> (i32, i32) {
    %c0_i32 = arith.constant 0 : i32
    %c0_i32_0 = arith.constant 0 : i32
    return %c0_i32, %arg0 : i32, i32
  }
}

</mosaic_0001>

<llo_original>
// kernel: tile.8
$region0: #{tile.8}
  #allocation2 [shape = 's32[1]{0}', space=sflag, size = 0x4, scoped, tag = 'scoped memory for tile.8']
  %s0 = inlined_call_operand.hbm [shape: f32[8], index: 0, kind: input, shape index: {}]
  %s1 = inlined_call_operand.vmem [shape: f32[4,8], index: 1, kind: output, shape index: {}]
  $region1: #{tile.8} parent=0
    #allocation0 [shape = 'u8[512]{0}', space=vmem, size = 0x400, scoped, tag = 'operand span for operand 0']
    #allocation1 [shape = 's32[1]{0}', space=sflag, size = 0x4, scoped, tag = 'scoped memory for tile.8']
    %2 = vsyncpa [#allocation1], 0
    // Predicated region
    $region2: #{tile.8} parent=1 // pred_check
      _
    $region3: #{tile.8} parent=1 // pred_check_branch
      %4 = sbr.rel (0) target = $region5
    $region4: #{tile.8} parent=1 // pred_region
      %s6 = ssub.s32 16, 16
      %7 = vsyncadd [#allocation1], %s6
      %s9 = sshll.u32 [#allocation0], 4
      %s10 = int_to_ptr.vmem [resolvable:$true] %s9
      %12 = dma.hbm_to_vmem [thread:$0]  %s0, 16, %s10, [#allocation1]
    $region5: #{tile.8} parent=1 // pred_fallthru
      _
    // Predicated region
    $region6: #{tile.8} parent=1 // pred_check
      _
    $region7: #{tile.8} parent=1 // pred_check_branch
      %14 = sbr.rel (0) target = $region9
    $region8: #{tile.8} parent=1 // pred_region
      %15 = dma.done [#allocation1], 16
    $region9: #{tile.8} parent=1 // pred_fallthru
      _
    %v16 = vld [vmem:[#allocation0] ss:$0 sm:$0xff]
    %17 = vst [vmem:[%s1] sm:$0xf] %v16
    %18 = vsyncpa [#allocation1], 1

// kernel: tile.0
$region0: #{tile.0}
  %s0 = inlined_call_operand.vmem [shape: f32[4,8], index: 0, kind: input, shape index: {}]
  %s1 = inlined_call_operand.vmem [shape: f32[32,1], index: 1, kind: output, shape index: {}]
  $region1: #{tile.0} parent=0
    #allocation0 [shape = 'u8[4096]{0}', space=vmem, size = 0x1000, scoped, tag = 'scoped mem for input reshape']
    %s3 = sshll.u32 1, 4
    %s4 = ssub.s32 %s3, 1
    %v5 = vld [vmem:[%s0] sm:%s4]
    %6 = vst [vmem:[#allocation0] sm:%s4] %v5
    %v7 = vld [vmem:[#allocation0] sm:$0xf]
    %vm8 = vcmask 7168
    %9 = vst.msk [vmem:[%s1] ss:$8 sm:$0xf] %vm8, %v7
    %v10 = vld [vmem:[#allocation0] sm:$0xf]
    %11 = vrot.lane.b32.xlu0 %v10, 127
    %v12 = vpop.permute.xlu0 %11
    %vm13 = vcmask 7168
    %s14 = scalar_lea.vmem %s1, 1
    %15 = vst.msk [vmem:[%s14] ss:$8 sm:$0xf] %vm13, %v12
    %v16 = vld [vmem:[#allocation0] sm:$0xf]
    %17 = vrot.lane.b32.xlu0 %v16, 126
    %v18 = vpop.permute.xlu0 %17
    %vm19 = vcmask 7168
    %s20 = scalar_lea.vmem %s1, 2
    %21 = vst.msk [vmem:[%s20] ss:$8 sm:$0xf] %vm19, %v18
    %v22 = vld [vmem:[#allocation0] sm:$0xf]
    %23 = vrot.lane.b32.xlu0 %v22, 125
    %v24 = vpop.permute.xlu0 %23
    %vm25 = vcmask 7168
    %s26 = scalar_lea.vmem %s1, 3
    %27 = vst.msk [vmem:[%s26] ss:$8 sm:$0xf] %vm25, %v24
    %v28 = vld [vmem:[#allocation0] sm:$0xf]
    %29 = vrot.lane.b32.xlu0 %v28, 124
    %v30 = vpop.permute.xlu0 %29
    %vm31 = vcmask 7168
    %s32 = scalar_lea.vmem %s1, 4
    %33 = vst.msk [vmem:[%s32] ss:$8 sm:$0xf] %vm31, %v30
    %v34 = vld [vmem:[#allocation0] sm:$0xf]
    %35 = vrot.lane.b32.xlu0 %v34, 123
    %v36 = vpop.permute.xlu0 %35
    %vm37 = vcmask 7168
    %s38 = scalar_lea.vmem %s1, 5
    %39 = vst.msk [vmem:[%s38] ss:$8 sm:$0xf] %vm37, %v36
    %v40 = vld [vmem:[#allocation0] sm:$0xf]
    %41 = vrot.lane.b32.xlu0 %v40, 122
    %v42 = vpop.permute.xlu0 %41
    %vm43 = vcmask 7168
    %s44 = scalar_lea.vmem %s1, 6
    %45 = vst.msk [vmem:[%s44] ss:$8 sm:$0xf] %vm43, %v42
    %v46 = vld [vmem:[#allocation0] sm:$0xf]
    %47 = vrot.lane.b32.xlu0 %v46, 121
    %v48 = vpop.permute.xlu0 %47
    %vm49 = vcmask 7168
    %s50 = scalar_lea.vmem %s1, 7
    %51 = vst.msk [vmem:[%s50] ss:$8 sm:$0xf] %vm49, %v48

// kernel: deconv2d_pallas.1
$region0: #{deconv2d_pallas.1}
  #allocation0 [shape = 'u32[]', space=smem, size = 0x4, offset = 0x4, fixed_abs, tag = 'smem constant byte address 0x4 - core index']
  #allocation1 [shape = 'u32[144,128]{1,0:T(1,128)}', space=vmem, size = 0x12000, scoped, tag = 'internal scratch']
  %s0 = inlined_call_operand.vmem [shape: f32[32,16], index: 0, kind: input, shape index: {}]
  %s1 = inlined_call_operand.vmem [shape: f32[32,1], index: 1, kind: input, shape index: {}]
  %s2 = inlined_call_operand.vmem [shape: f32[16,768], index: 2, kind: input, shape index: {}]
  %s3 = inlined_call_operand.vmem [shape: f32[32,768], index: 3, kind: output, shape index: {}]
  %s4 = sld [smem:[#allocation0]]
  $region87: #{deconv2d_pallas.1} parent=0
    _
  %s6 = ssub.s32 1, %s4
  %s7 = scalar_select 0, %s6, %s4
  $region1: #{deconv2d_pallas.1} parent=0
    #allocation2 [shape = 'u8[49152]{0}', space=vmem, size = 0xc000, scoped, tag = 'input window, operand 2']
    #allocation3 [shape = 'u8[98304]{0}', space=vmem, size = 0x18000, scoped, tag = 'output window, operand 0']
    loop: start=0, step=1, limit=4
    $region2: #{deconv2d_pallas.1} parent=1 // loop_pre_header
      _
    $region3: #{deconv2d_pallas.1} parent=1 // loop_header
      %s9 = sphi 0, %s13
      %p10 = scmp.ge.s32.totalorder %s9, 4
      %s17 = sphi 0, %s17
      %s19 = sphi 0, %s17
      %s20 = sphi 0, %s19
      %s34 = sphi 0, %s20
      %s38 = sphi 0, %s38
      %s40 = sphi 0, %s38
      %s41 = sphi 0, %s40
      %s55 = sphi 0, %s41
      %s61 = sphi 0, %s63
      %s64 = sphi 0, %s61
      %s65 = sphi 0, %s64
      %s81 = sphi 0, %s65
      %s87 = sphi 0, %s89
      %s90 = sphi 0, %s87
      %s91 = sphi 0, %s90
      %s107 = sphi 0, %s91
    $region4: #{deconv2d_pallas.1} parent=1 // loop_header_branch
      %12 = sbr.rel (%p10) target = $region8
    $region5: #{deconv2d_pallas.1} parent=1 // loop_body
      %s14 = ssub.s32 %s9, 1
      %s15 = ssub.s32 %s9, 2
      %s16 = sadd.s32 %s9, 1
      %s18 = sadd.s32 %s17, 1
      %p21 = scmp.eq.s32.totalorder %s9, 1
      %p22 = scmp.ne.s32.totalorder %s17, %s19
      %p23 = scmp.eq.s32.totalorder %s9, 0
      %p24 = por %p22, %p23
      %p25 = scmp.ne.s32.totalorder %s17, %s19
      %p26 = scmp.eq.s32.totalorder %s14, 1
      %p27 = por %p25, %p26
      %p28 = scmp.ne.s32.totalorder %s19, %s20
      %p29 = scmp.eq.s32.totalorder %s14, 0
      %p30 = por %p28, %p29
      %p31 = scmp.ne.s32.totalorder %s19, %s20
      %p32 = scmp.eq.s32.totalorder %s15, 1
      %p33 = por %p31, %p32
      %p35 = scmp.ne.s32.totalorder %s20, %s34
      %p36 = scmp.eq.s32.totalorder %s15, 0
      %p37 = por %p35, %p36
      %s39 = sadd.s32 %s38, 1
      %p42 = scmp.eq.s32.totalorder %s9, 1
      %p43 = scmp.ne.s32.totalorder %s38, %s40
      %p44 = scmp.eq.s32.totalorder %s9, 0
      %p45 = por %p43, %p44
      %p46 = scmp.ne.s32.totalorder %s38, %s40
      %p47 = scmp.eq.s32.totalorder %s14, 1
      %p48 = por %p46, %p47
      %p49 = scmp.ne.s32.totalorder %s40, %s41
      %p50 = scmp.eq.s32.totalorder %s14, 0
      %p51 = por %p49, %p50
      %p52 = scmp.ne.s32.totalorder %s40, %s41
      %p53 = scmp.eq.s32.totalorder %s15, 1
      %p54 = por %p52, %p53
      %p56 = scmp.ne.s32.totalorder %s41, %s55
      %p57 = scmp.eq.s32.totalorder %s15, 0
      %p58 = por %p56, %p57
      %s59 = ssub.s32 %s9, %s16
      %p60 = scmp.eq.s32.totalorder %s59, 0
      %s62 = sadd.s32 %s61, 1
      %s63 = scalar_select %p60, %s61, %s62
      %p66 = pneg %p60
      %p67 = scmp.eq.s32.totalorder %s9, 1
      %p68 = por %p66, %p67
      %p69 = scmp.ne.s32.totalorder %s61, %s64
      %p70 = scmp.eq.s32.totalorder %s9, 0
      %p71 = por %p69, %p70
      %p72 = scmp.ne.s32.totalorder %s61, %s64
      %p73 = scmp.eq.s32.totalorder %s14, 1
      %p74 = por %p72, %p73
      %p75 = scmp.ne.s32.totalorder %s64, %s65
      %p76 = scmp.eq.s32.totalorder %s14, 0
      %p77 = por %p75, %p76
      %p78 = scmp.ne.s32.totalorder %s64, %s65
      %p79 = scmp.eq.s32.totalorder %s15, 1
      %p80 = por %p78, %p79
      %p82 = scmp.ne.s32.totalorder %s65, %s81
      %p83 = scmp.eq.s32.totalorder %s15, 0
      %p84 = por %p82, %p83
      %s85 = ssub.s32 %s9, %s16
      %p86 = scmp.eq.s32.totalorder %s85, 0
      %s88 = sadd.s32 %s87, 1
      %s89 = scalar_select %p86, %s87, %s88
      %p92 = pneg %p86
      %p93 = scmp.eq.s32.totalorder %s9, 1
      %p94 = por %p92, %p93
      %p95 = scmp.ne.s32.totalorder %s87, %s90
      %p96 = scmp.eq.s32.totalorder %s9, 0
      %p97 = por %p95, %p96
      %p98 = scmp.ne.s32.totalorder %s87, %s90
      %p99 = scmp.eq.s32.totalorder %s14, 1
      %p100 = por %p98, %p99
      %p101 = scmp.ne.s32.totalorder %s90, %s91
      %p102 = scmp.eq.s32.totalorder %s14, 0
      %p103 = por %p101, %p102
      %p104 = scmp.ne.s32.totalorder %s90, %s91
      %p105 = scmp.eq.s32.totalorder %s15, 1
      %p106 = por %p104, %p105
      %p108 = scmp.ne.s32.totalorder %s91, %s107
      %p109 = scmp.eq.s32.totalorder %s15, 0
      %p110 = por %p108, %p109
      %p111 = scmp.le.s32.totalorder 1, %s9
      %p112 = scmp.lt.s32.totalorder %s9, 3
      %p113 = pnand %p111, %p112
      %p114 = pneg %p113
      // Predicated region
      $region9: #{deconv2d_pallas.1} parent=5 // pred_check
        _
      $region10: #{deconv2d_pallas.1} parent=5 // pred_check_branch
        %116 = sbr.rel (%p113) target = $region12
      $region11: #{deconv2d_pallas.1} parent=5 // pred_region
        %s117 = ssub.s32 %s9, 1
        // Predicated region
        $region13: #{deconv2d_pallas.1} parent=11 // pred_check
          %p118 = pneg %p30
        $region14: #{deconv2d_pallas.1} parent=11 // pred_check_branch
          %120 = sbr.rel (%p118) target = $region16
        $region15: #{deconv2d_pallas.1} parent=11 // pred_region
          _
        $region16: #{deconv2d_pallas.1} parent=11 // pred_fallthru
          _
        // Predicated region
        $region17: #{deconv2d_pallas.1} parent=11 // pred_check
          %p121 = pneg %p51
        $region18: #{deconv2d_pallas.1} parent=11 // pred_check_branch
          %123 = sbr.rel (%p121) target = $region20
        $region19: #{deconv2d_pallas.1} parent=11 // pred_region
          _
        $region20: #{deconv2d_pallas.1} parent=11 // pred_fallthru
          _
      $region12: #{deconv2d_pallas.1} parent=5 // pred_fallthru
        _
      %p124 = scmp.lt.s32.totalorder %s9, 2
      // Predicated region
      $region21: #{deconv2d_pallas.1} parent=5 // pred_check
        %p125 = pneg %p124
      $region22: #{deconv2d_pallas.1} parent=5 // pred_check_branch
        %127 = sbr.rel (%p125) target = $region24
      $region23: #{deconv2d_pallas.1} parent=5 // pred_region
        // Predicated region
        $region25: #{deconv2d_pallas.1} parent=23 // pred_check
          %p128 = pneg %p71
        $region26: #{deconv2d_pallas.1} parent=23 // pred_check_branch
          %130 = sbr.rel (%p128) target = $region28
        $region27: #{deconv2d_pallas.1} parent=23 // pred_region
          %s131 = sand.u32 %s61, 1
          %s132 = sand.u32 %s61, 1
          %s133 = smul.addr %s132, 48
          %s134 = scalar_lea.vmem [#allocation2], %s133
          %s135 = smul.u32 3, %s9
          %s136 = smul.addr %s135, 8
          %s137 = scalar_lea.vmem %s2, %s136
          // Predicated region
          $region29: #{deconv2d_pallas.1} parent=27 // pred_check
            _
          $region30: #{deconv2d_pallas.1} parent=27 // pred_check_branch
            %139 = sbr.rel (0) target = $region32
          $region31: #{deconv2d_pallas.1} parent=27 // pred_region
            // Predicated region
            $region33: #{deconv2d_pallas.1} parent=31 // pred_check
              _
            $region34: #{deconv2d_pallas.1} parent=31 // pred_check_branch
              %141 = sbr.rel (0) target = $region36
            $region35: #{deconv2d_pallas.1} parent=31 // pred_region
              loop: start=0, step=1, limit=1
              $region37: #{deconv2d_pallas.1} parent=35 // loop_pre_header
                _
              $region38: #{deconv2d_pallas.1} parent=35 // loop_header
                %s143 = sphi 0, %s147
                %p144 = scmp.ge.s32.totalorder %s143, 1
                %s148 = sphi %s137, %s137
                %s149 = sphi %s134, %s134
              $region39: #{deconv2d_pallas.1} parent=35 // loop_header_branch
                %146 = sbr.rel (%p144) target = $region43
              $region40: #{deconv2d_pallas.1} parent=35 // loop_body
                %v150 = vld [vmem:[%s148] sm:$0xff]
                %151 = vst [vmem:[%s149] sm:$0xff] %v150
                %v152 = vld [vmem:[%s148 + $0x8] sm:$0xff]
                %153 = vst [vmem:[%s149 + $0x8] sm:$0xff] %v152
                %v154 = vld [vmem:[%s148 + $0x10] sm:$0xff]
                %155 = vst [vmem:[%s149 + $0x10] sm:$0xff] %v154
                %v156 = vld [vmem:[%s148 + $0x30] sm:$0xff]
                %157 = vst [vmem:[%s149 + $0x18] sm:$0xff] %v156
                %v158 = vld [vmem:[%s148 + $0x38] sm:$0xff]
                %159 = vst [vmem:[%s149 + $0x20] sm:$0xff] %v158
                %v160 = vld [vmem:[%s148 + $0x40] sm:$0xff]
                %161 = vst [vmem:[%s149 + $0x28] sm:$0xff] %v160
              $region41: #{deconv2d_pallas.1} parent=35 // loop_footer
                %s147 = sadd.s32 1, %s143
              $region42: #{deconv2d_pallas.1} parent=35 // loop_footer_branch
                %142 = sbr.rel target = $region38
              $region43: #{deconv2d_pallas.1} parent=35 // loop_exit
                _
            $region36: #{deconv2d_pallas.1} parent=31 // pred_fallthru
              _
            // Predicated region
            $region44: #{deconv2d_pallas.1} parent=31 // pred_check
              _
            $region45: #{deconv2d_pallas.1} parent=31 // pred_check_branch
              %163 = sbr.rel target = $region47
            $region46: #{deconv2d_pallas.1} parent=31 // pred_region
              _
            $region47: #{deconv2d_pallas.1} parent=31 // pred_fallthru
              _
          $region32: #{deconv2d_pallas.1} parent=27 // pred_fallthru
            _
          %164 = vnop
        $region28: #{deconv2d_pallas.1} parent=23 // pred_fallthru
          _
      $region24: #{deconv2d_pallas.1} parent=5 // pred_fallthru
        _
      %p165 = scmp.le.s32.totalorder 1, %s9
      %p166 = scmp.lt.s32.totalorder %s9, 3
      %p167 = pnand %p165, %p166
      %p168 = pneg %p167
      // Predicated region
      $region48: #{deconv2d_pallas.1} parent=5 // pred_check
        _
      $region49: #{deconv2d_pallas.1} parent=5 // pred_check_branch
        %170 = sbr.rel (%p167) target = $region51
      $region50: #{deconv2d_pallas.1} parent=5 // pred_region
        %s171 = ssub.s32 %s9, 1
        %s172 = sand.u32 %s64, 1
        %s173 = sand.u32 %s64, 1
        %s174 = smul.addr %s173, 48
        %s175 = scalar_lea.vmem [#allocation2], %s174
        // Predicated region
        $region52: #{deconv2d_pallas.1} parent=50 // pred_check
          %p176 = pneg %p77
        $region53: #{deconv2d_pallas.1} parent=50 // pred_check_branch
          %178 = sbr.rel (%p176) target = $region55
        $region54: #{deconv2d_pallas.1} parent=50 // pred_region
          _
        $region55: #{deconv2d_pallas.1} parent=50 // pred_fallthru
          _
        %p179 = pneg %p30
        %p180 = pneg %p27
        %p181 = pneg %p51
        %p182 = pneg %p48
        %s183 = sand.u32 %s64, 1
        %s184 = sand.u32 %s64, 1
        %s185 = smul.addr %s184, 48
        %s186 = scalar_lea.vmem [#allocation2], %s185
        %p187 = pneg %p77
        %p188 = pneg %p74
        %p189 = pneg %p103
        %p190 = pneg %p100
        %s191 = sand.u32 %s90, 1
        %s192 = sand.u32 %s90, 1
        %s193 = smul.addr %s192, 96
        %s194 = scalar_lea.vmem [#allocation3], %s193
        %s195 = smul.u32 3, %s14
        %s196 = smul.u32 3, %s14
        %v197 = vld [vmem:[%s0] sm:$0xff]
        %v198 = vld [vmem:[%s0 + $0x8] sm:$0xff]
        %v199 = vld [vmem:[%s0 + $0x10] sm:$0xff]
        %v200 = vld [vmem:[%s0 + $0x18] sm:$0xff]
        %v201 = vld [vmem:[%s175] sm:$0xff]
        %v202 = vld [vmem:[%s175 + $0x8] sm:$0xff]
        %v203 = vld [vmem:[%s175 + $0x10] sm:$0xff]
        %v204 = vld [vmem:[%s175 + $0x18] sm:$0xff]
        %v205 = vld [vmem:[%s175 + $0x20] sm:$0xff]
        %v206 = vld [vmem:[%s175 + $0x28] sm:$0xff]
        %v207 = vld [vmem:[%s1] sm:$0xff]
        %v208 = vld [vmem:[%s1 + $0x8] sm:$0xff]
        %v209 = vld [vmem:[%s1 + $0x10] sm:$0xff]
        %v210 = vld [vmem:[%s1 + $0x18] sm:$0xff]
        %212 = vset.pattern.permute.xlu0 0
        %213 = vperm.xlu0 %212, %v207
        %v214 = vpop.permute.xlu0 %213
        %217 = vset.pattern.permute.xlu0 0
        %218 = vperm.xlu0 %217, %v208
        %v219 = vpop.permute.xlu0 %218
        %222 = vset.pattern.permute.xlu0 0
        %223 = vperm.xlu0 %222, %v209
        %v224 = vpop.permute.xlu0 %223
        %227 = vset.pattern.permute.xlu0 0
        %228 = vperm.xlu0 %227, %v210
        %v229 = vpop.permute.xlu0 %228
        %vm231 = vcmask 130048
        %v233 = vsel %vm231, %v197, 0
        %v236 = vsel %vm231, %v198, 0
        %v239 = vsel %vm231, %v199, 0
        %v242 = vsel %vm231, %v200, 0
        %244 = vmatprep.subr.mxu0 0.0
        %245 = vmatpush1.msra.mxu0 0.0
        %246 = vmatprep.subr.mxu0 0.0
        %247 = vmatpush1.msra.mxu0 0.0
        %248 = vmatprep.subr.mxu0 0.0
        %249 = vmatpush1.msra.mxu0 0.0
        %250 = vmatprep.subr.mxu0 0.0
        %251 = vmatpush1.msra.mxu0 0.0
        %252 = vmatprep.subr.mxu0 0.0
        %253 = vmatpush1.msra.mxu0 0.0
        %254 = vmatprep.subr.mxu0 0.0
        %255 = vmatpush1.msra.mxu0 0.0
        %256 = vmatprep.subr.mxu0 0.0
        %257 = vmatpush1.msra.mxu0 0.0
        %258 = vmatprep.subr.mxu0 0.0
        %259 = vmatpush1.msra.mxu0 0.0
        %260 = vmatprep.subr.mxu0 0.0
        %261 = vmatpush1.msra.mxu0 0.0
        %262 = vmatprep.subr.mxu0 0.0
        %263 = vmatpush1.msra.mxu0 0.0
        %264 = vmatprep.subr.mxu0 0.0
        %265 = vmatpush1.msra.mxu0 0.0
        %266 = vmatprep.subr.mxu0 0.0
        %267 = vmatpush1.msra.mxu0 0.0
        %268 = vmatprep.subr.mxu0 0.0
        %269 = vmatpush1.msra.mxu0 0.0
        %270 = vmatprep.subr.mxu0 0.0
        %271 = vmatpush1.msra.mxu0 0.0
        %272 = vmatprep.subr.mxu0 %v205
        %273 = vmatpush1.msra.mxu0 %v204
        %274 = vmatprep.subr.mxu0 %v202
        %275 = vmatpush1.msra.mxu0 %v201
        %276 = vmatprep.subr.mxu0 0.0
        %277 = vmatpush2.msra.mxu0 0.0
        %278 = vmatprep.subr.mxu0 0.0
        %279 = vmatpush2.msra.mxu0 0.0
        %280 = vmatprep.subr.mxu0 0.0
        %281 = vmatpush2.msra.mxu0 0.0
        %282 = vmatprep.subr.mxu0 0.0
        %283 = vmatpush2.msra.mxu0 0.0
        %284 = vmatprep.subr.mxu0 0.0
        %285 = vmatpush2.msra.mxu0 0.0
        %286 = vmatprep.subr.mxu0 0.0
        %287 = vmatpush2.msra.mxu0 0.0
        %288 = vmatprep.subr.mxu0 0.0
        %289 = vmatpush2.msra.mxu0 0.0
        %290 = vmatprep.subr.mxu0 0.0
        %291 = vmatpush2.msra.mxu0 0.0
        %292 = vmatprep.subr.mxu0 0.0
        %293 = vmatpush2.msra.mxu0 0.0
        %294 = vmatprep.subr.mxu0 0.0
        %295 = vmatpush2.msra.mxu0 0.0
        %296 = vmatprep.subr.mxu0 0.0
        %297 = vmatpush2.msra.mxu0 0.0
        %298 = vmatprep.subr.mxu0 0.0
        %299 = vmatpush2.msra.mxu0 0.0
        %300 = vmatprep.subr.mxu0 0.0
        %301 = vmatpush2.msra.mxu0 0.0
        %302 = vmatprep.subr.mxu0 0.0
        %303 = vmatpush2.msra.mxu0 0.0
        %304 = vmatprep.subr.mxu0 0.0
        %305 = vmatpush2.msra.mxu0 0.0
        %306 = vmatprep.subr.mxu0 0.0
        %307 = vmatpush2.msra.mxu0 0.0
        %308 = vmatprep.mubr.f32.mxu0 0.0
        %309 = vmatmul.mubr.f32.gmra.mxu0 %v233
        %v310 = vpop.f32.mrf.mxu0
        %v311 = vadd.f32 %v214, %v310
        %v312 = vpop.f32.mrf.mxu0
        %v313 = vadd.f32 %v214, %v312
        %314 = vmatprep.mubr.f32.mxu0 0.0
        %315 = vmatmul.mubr.f32.gmra.mxu0 %v236
        %v316 = vpop.f32.mrf.mxu0
        %v317 = vadd.f32 %v219, %v316
        %v318 = vpop.f32.mrf.mxu0
        %v319 = vadd.f32 %v219, %v318
        %320 = vmatprep.mubr.f32.mxu0 0.0
        %321 = vmatmul.mubr.f32.gmra.mxu0 %v239
        %v322 = vpop.f32.mrf.mxu0
        %v323 = vadd.f32 %v224, %v322
        %v324 = vpop.f32.mrf.mxu0
        %v325 = vadd.f32 %v224, %v324
        %326 = vmatprep.mubr.f32.mxu0 0.0
        %327 = vmatmul.mubr.f32.gmra.mxu0 %v242
        %v328 = vpop.f32.mrf.mxu0
        %v329 = vadd.f32 %v229, %v328
        %v330 = vpop.f32.mrf.mxu0
        %v331 = vadd.f32 %v229, %v330
        %332 = vdwg.mxu0
        %333 = vmatprep.subr.mxu0 0.0
        %334 = vmatpush1.msra.mxu0 0.0
        %335 = vmatprep.subr.mxu0 0.0
        %336 = vmatpush1.msra.mxu0 0.0
        %337 = vmatprep.subr.mxu0 0.0
        %338 = vmatpush1.msra.mxu0 0.0
        %339 = vmatprep.subr.mxu0 0.0
        %340 = vmatpush1.msra.mxu0 0.0
        %341 = vmatprep.subr.mxu0 0.0
        %342 = vmatpush1.msra.mxu0 0.0
        %343 = vmatprep.subr.mxu0 0.0
        %344 = vmatpush1.msra.mxu0 0.0
        %345 = vmatprep.subr.mxu0 0.0
        %346 = vmatpush1.msra.mxu0 0.0
        %347 = vmatprep.subr.mxu0 0.0
        %348 = vmatpush1.msra.mxu0 0.0
        %349 = vmatprep.subr.mxu0 0.0
        %350 = vmatpush1.msra.mxu0 0.0
        %351 = vmatprep.subr.mxu0 0.0
        %352 = vmatpush1.msra.mxu0 0.0
        %353 = vmatprep.subr.mxu0 0.0
        %354 = vmatpush1.msra.mxu0 0.0
        %355 = vmatprep.subr.mxu0 0.0
        %356 = vmatpush1.msra.mxu0 0.0
        %357 = vmatprep.subr.mxu0 0.0
        %358 = vmatpush1.msra.mxu0 0.0
        %359 = vmatprep.subr.mxu0 0.0
        %360 = vmatpush1.msra.mxu0 0.0
        %361 = vmatprep.subr.mxu0 0.0
        %362 = vmatpush1.msra.mxu0 %v206
        %363 = vmatprep.subr.mxu0 0.0
        %364 = vmatpush1.msra.mxu0 %v203
        %365 = vmatprep.subr.mxu0 0.0
        %366 = vmatpush2.msra.mxu0 0.0
        %367 = vmatprep.subr.mxu0 0.0
        %368 = vmatpush2.msra.mxu0 0.0
        %369 = vmatprep.subr.mxu0 0.0
        %370 = vmatpush2.msra.mxu0 0.0
        %371 = vmatprep.subr.mxu0 0.0
        %372 = vmatpush2.msra.mxu0 0.0
        %373 = vmatprep.subr.mxu0 0.0
        %374 = vmatpush2.msra.mxu0 0.0
        %375 = vmatprep.subr.mxu0 0.0
        %376 = vmatpush2.msra.mxu0 0.0
        %377 = vmatprep.subr.mxu0 0.0
        %378 = vmatpush2.msra.mxu0 0.0
        %379 = vmatprep.subr.mxu0 0.0
        %380 = vmatpush2.msra.mxu0 0.0
        %381 = vmatprep.subr.mxu0 0.0
        %382 = vmatpush2.msra.mxu0 0.0
        %383 = vmatprep.subr.mxu0 0.0
        %384 = vmatpush2.msra.mxu0 0.0
        %385 = vmatprep.subr.mxu0 0.0
        %386 = vmatpush2.msra.mxu0 0.0
        %387 = vmatprep.subr.mxu0 0.0
        %388 = vmatpush2.msra.mxu0 0.0
        %389 = vmatprep.subr.mxu0 0.0
        %390 = vmatpush2.msra.mxu0 0.0
        %391 = vmatprep.subr.mxu0 0.0
        %392 = vmatpush2.msra.mxu0 0.0
        %393 = vmatprep.subr.mxu0 0.0
        %394 = vmatpush2.msra.mxu0 0.0
        %395 = vmatprep.subr.mxu0 0.0
        %396 = vmatpush2.msra.mxu0 0.0
        %397 = vmatprep.mubr.f32.mxu0 0.0
        %398 = vmatmul.mubr.f32.gmra.mxu0 %v233
        %v399 = vpop.f32.mrf.mxu0
        %v400 = vadd.f32 %v214, %v399
        %v401 = vpop.f32.mrf.mxu0
        %402 = vmatprep.mubr.f32.mxu0 0.0
        %403 = vmatmul.mubr.f32.gmra.mxu0 %v236
        %v404 = vpop.f32.mrf.mxu0
        %v405 = vadd.f32 %v219, %v404
        %v406 = vpop.f32.mrf.mxu0
        %407 = vmatprep.mubr.f32.mxu0 0.0
        %408 = vmatmul.mubr.f32.gmra.mxu0 %v239
        %v409 = vpop.f32.mrf.mxu0
        %v410 = vadd.f32 %v224, %v409
        %v411 = vpop.f32.mrf.mxu0
        %412 = vmatprep.mubr.f32.mxu0 0.0
        %413 = vmatmul.mubr.f32.gmra.mxu0 %v242
        %v414 = vpop.f32.mrf.mxu0
        %v415 = vadd.f32 %v229, %v414
        %v416 = vpop.f32.mrf.mxu0
        %417 = vdwg.mxu0
        %418 = vst [vmem:[%s194] sm:$0xff] %v311
        %419 = vst [vmem:[%s194 + $0x8] sm:$0xff] %v313
        %420 = vst [vmem:[%s194 + $0x10] sm:$0xff] %v400
        %421 = vst [vmem:[%s194 + $0x18] sm:$0xff] %v317
        %422 = vst [vmem:[%s194 + $0x20] sm:$0xff] %v319
        %423 = vst [vmem:[%s194 + $0x28] sm:$0xff] %v405
        %424 = vst [vmem:[%s194 + $0x30] sm:$0xff] %v323
        %425 = vst [vmem:[%s194 + $0x38] sm:$0xff] %v325
        %426 = vst [vmem:[%s194 + $0x40] sm:$0xff] %v410
        %427 = vst [vmem:[%s194 + $0x48] sm:$0xff] %v329
        %428 = vst [vmem:[%s194 + $0x50] sm:$0xff] %v331
        %429 = vst [vmem:[%s194 + $0x58] sm:$0xff] %v415
        %s430 = sand.u32 %s90, 1
        %s431 = sand.u32 %s90, 1
        %s432 = smul.addr %s431, 96
        %s433 = scalar_lea.vmem [#allocation3], %s432
        // Predicated region
        $region56: #{deconv2d_pallas.1} parent=50 // pred_check
          %p434 = pneg %p100
        $region57: #{deconv2d_pallas.1} parent=50 // pred_check_branch
          %436 = sbr.rel (%p434) target = $region59
        $region58: #{deconv2d_pallas.1} parent=50 // pred_region
          %s437 = smul.u32 3, %s14
          %s438 = smul.addr %s437, 8
          %s439 = scalar_lea.vmem %s3, %s438
          // Predicated region
          $region60: #{deconv2d_pallas.1} parent=58 // pred_check
            _
          $region61: #{deconv2d_pallas.1} parent=58 // pred_check_branch
            %441 = sbr.rel (0) target = $region63
          $region62: #{deconv2d_pallas.1} parent=58 // pred_region
            // Predicated region
            $region64: #{deconv2d_pallas.1} parent=62 // pred_check
              _
            $region65: #{deconv2d_pallas.1} parent=62 // pred_check_branch
              %443 = sbr.rel (0) target = $region67
            $region66: #{deconv2d_pallas.1} parent=62 // pred_region
              loop: start=0, step=1, limit=1
              $region68: #{deconv2d_pallas.1} parent=66 // loop_pre_header
                _
              $region69: #{deconv2d_pallas.1} parent=66 // loop_header
                %s445 = sphi 0, %s449
                %p446 = scmp.ge.s32.totalorder %s445, 1
                %s450 = sphi %s433, %s433
                %s451 = sphi %s439, %s439
              $region70: #{deconv2d_pallas.1} parent=66 // loop_header_branch
                %448 = sbr.rel (%p446) target = $region74
              $region71: #{deconv2d_pallas.1} parent=66 // loop_body
                %v452 = vld [vmem:[%s450] sm:$0xff]
                %453 = vst [vmem:[%s451] sm:$0xff] %v452
                %v454 = vld [vmem:[%s450 + $0x8] sm:$0xff]
                %455 = vst [vmem:[%s451 + $0x8] sm:$0xff] %v454
                %v456 = vld [vmem:[%s450 + $0x10] sm:$0xff]
                %457 = vst [vmem:[%s451 + $0x10] sm:$0xff] %v456
                %v458 = vld [vmem:[%s450 + $0x18] sm:$0xff]
                %459 = vst [vmem:[%s451 + $0x30] sm:$0xff] %v458
                %v460 = vld [vmem:[%s450 + $0x20] sm:$0xff]
                %461 = vst [vmem:[%s451 + $0x38] sm:$0xff] %v460
                %v462 = vld [vmem:[%s450 + $0x28] sm:$0xff]
                %463 = vst [vmem:[%s451 + $0x40] sm:$0xff] %v462
                %v464 = vld [vmem:[%s450 + $0x30] sm:$0xff]
                %465 = vst [vmem:[%s451 + $0x60] sm:$0xff] %v464
                %v466 = vld [vmem:[%s450 + $0x38] sm:$0xff]
                %467 = vst [vmem:[%s451 + $0x68] sm:$0xff] %v466
                %v468 = vld [vmem:[%s450 + $0x40] sm:$0xff]
                %469 = vst [vmem:[%s451 + $0x70] sm:$0xff] %v468
                %v470 = vld [vmem:[%s450 + $0x48] sm:$0xff]
                %471 = vst [vmem:[%s451 + $0x90] sm:$0xff] %v470
                %v472 = vld [vmem:[%s450 + $0x50] sm:$0xff]
                %473 = vst [vmem:[%s451 + $0x98] sm:$0xff] %v472
                %v474 = vld [vmem:[%s450 + $0x58] sm:$0xff]
                %475 = vst [vmem:[%s451 + $0xa0] sm:$0xff] %v474
              $region72: #{deconv2d_pallas.1} parent=66 // loop_footer
                %s449 = sadd.s32 1, %s445
              $region73: #{deconv2d_pallas.1} parent=66 // loop_footer_branch
                %444 = sbr.rel target = $region69
              $region74: #{deconv2d_pallas.1} parent=66 // loop_exit
                _
            $region67: #{deconv2d_pallas.1} parent=62 // pred_fallthru
              _
            // Predicated region
            $region75: #{deconv2d_pallas.1} parent=62 // pred_check
              _
            $region76: #{deconv2d_pallas.1} parent=62 // pred_check_branch
              %477 = sbr.rel target = $region78
            $region77: #{deconv2d_pallas.1} parent=62 // pred_region
              _
            $region78: #{deconv2d_pallas.1} parent=62 // pred_fallthru
              _
          $region63: #{deconv2d_pallas.1} parent=58 // pred_fallthru
            _
          %478 = vnop
        $region59: #{deconv2d_pallas.1} parent=50 // pred_fallthru
          _
      $region51: #{deconv2d_pallas.1} parent=5 // pred_fallthru
        _
      %p479 = scmp.le.s32.totalorder 2, %s9
      // Predicated region
      $region79: #{deconv2d_pallas.1} parent=5 // pred_check
        %p480 = pneg %p479
      $region80: #{deconv2d_pallas.1} parent=5 // pred_check_branch
        %482 = sbr.rel (%p480) target = $region82
      $region81: #{deconv2d_pallas.1} parent=5 // pred_region
        %s483 = ssub.s32 %s9, 2
        // Predicated region
        $region83: #{deconv2d_pallas.1} parent=81 // pred_check
          %p484 = pneg %p106
        $region84: #{deconv2d_pallas.1} parent=81 // pred_check_branch
          %486 = sbr.rel (%p484) target = $region86
        $region85: #{deconv2d_pallas.1} parent=81 // pred_region
          %s487 = sand.u32 %s91, 1
          %s488 = sand.u32 %s91, 1
          %s489 = smul.addr %s488, 96
          %s490 = scalar_lea.vmem [#allocation3], %s489
        $region86: #{deconv2d_pallas.1} parent=81 // pred_fallthru
          _
      $region82: #{deconv2d_pallas.1} parent=5 // pred_fallthru
        _
    $region6: #{deconv2d_pallas.1} parent=1 // loop_footer
      %s13 = sadd.s32 1, %s9
    $region7: #{deconv2d_pallas.1} parent=1 // loop_footer_branch
      %8 = sbr.rel target = $region3
    $region8: #{deconv2d_pallas.1} parent=1 // loop_exit
      _

</llo_original>
